<compile_context>
chip_gen: v5e
topology: v5e:2x2
jax: 0.10.0
libtpu: 0.0.40
codegen_flags: <defaults>
</compile_context>

<pallas_src>
import jax
import jax.numpy as jnp
from jax import lax
from jax.experimental import pallas as pl
from jax.experimental.pallas import tpu as pltpu


def _vmem_capacity_bytes():
    """Physical VMEM per TensorCore; conservative fallback if the query is unavailable."""
    try:
        cap = getattr(pltpu.get_tpu_info(), "vmem_capacity_bytes", None)
        if cap:
            return int(cap)
    except Exception:
        pass
    return 64 << 20  # v7x per-TC VMEM (smallest of v5e/v6e/v7x)


def conv_layer_deepfuse(x_nchw, weight, bias, gamma, beta, *, eps=1e-5):
    """Forward pass of ConvLayer_DeepFuse. x_nchw: (N, Cin, H, W) f32 -> (N, Cout, H, W)."""
    N, Cin, H, W = x_nchw.shape
    Cout, Cin_w, KH, KW = weight.shape
    assert Cin == Cin_w and KH == KW and KH in (5, 7)
    KK = KH
    PAD = KK // 2
    NT = KK * KK                                  # number of taps

    # ---- patch-row grouping: each scratch store covers 8 aligned sublanes when possible ----
    if Cin in (1, 2, 4):
        TPG = 8 // Cin                            # taps per 8-row store group
    else:
        TPG = 1                                   # per-tap stores (aligned when Cin % 8 == 0)
    NTP = ((NT + TPG - 1) // TPG) * TPG           # taps incl. zero-padding taps
    KRP = NTP * Cin                               # patch rows (matmul contraction dim)

    Lp = (H + 2 * PAD) * W + 2 * PAD              # row-padded flattened length per channel
    M = N * H * W

    # ---- VMEM-budget-aware band selection + explicit vmem limit ----
    cap = _vmem_capacity_bytes()
    budget = max(int(cap * 0.8) - (8 << 20), 8 << 20)

    def _need_bytes(L):
        x_blk = 2 * Cin * Lp * 4                              # double-buffered f32 input block
        w_blk = 2 * Cout * KRP * 2                            # bf16 weight matrix
        patch = KRP * L * 2                                   # bf16 patch scratch (1 buffer)
        o_blk = 2 * max(Cout * L * 4, 2 * Cout * 128 * 4)     # pass-2 out vs pass-1 stats
        return x_blk + w_blk + patch + o_blk + (1 << 20)      # + margin

    cands = []
    for nb_c in range(1, H + 1):
        if H % nb_c:
            continue
        L_c = (H // nb_c) * W
        if nb_c > 1 and L_c % 128:                            # banded output blocks stay lane-aligned
            continue
        cands.append((nb_c, L_c, _need_bytes(L_c)))
    fits = [c for c in cands if c[2] <= budget]
    if fits:
        # prefer the widest lane tile up to 2048 (register-friendly, >=85% of HBM roofline)
        sweet = [c for c in fits if c[1] <= 2048]
        nb, L, need = max(sweet, key=lambda c: c[1]) if sweet else min(fits, key=lambda c: c[1])
    else:
        nb, L, need = min(cands, key=lambda c: c[2])          # smallest footprint; best effort
    vmem_limit = int(min(cap - (4 << 20), max(need + (16 << 20), 32 << 20)))

    # ---- host-side prep: cheap pads / reshapes only (no im2col, no data transposes) ----
    xf = x_nchw.astype(jnp.float32)
    xf = jnp.pad(xf, ((0, 0), (0, 0), (PAD, PAD), (0, 0)))    # zero-pad H
    xf = xf.reshape(N, Cin, (H + 2 * PAD) * W)
    xf = jnp.pad(xf, ((0, 0), (0, 0), (PAD, PAD)))            # guard cells at flat ends
    # weight -> (Cout, KRP) bf16; column (kh*KK + kw)*Cin + ci, zero-padded tail taps
    wmat = jnp.transpose(weight.astype(jnp.float32), (0, 2, 3, 1)).reshape(Cout, NT * Cin)
    wmat = jnp.pad(wmat, ((0, 0), (0, KRP - NT * Cin))).astype(jnp.bfloat16)
    # tiny (1, L) column-index vector: masks are built in-kernel from comparisons
    colidx = jnp.tile(jnp.arange(W, dtype=jnp.int32), H // nb).reshape(1, L)

    def conv_tile(x_ref, wmat_ref, col_ref, p_ref):
        """(Cout, L) f32 raw conv (no bias) for the current (image, band) grid step."""
        if nb > 1:
            base = pl.multiple_of(pl.program_id(1) * L, 128)
        else:
            base = 0
        colv = col_ref[...]                                    # (1, L) int32
        # width-validity: kills the wrapped-row taps of the row-flattened layout
        valid = {kw: (colv + kw >= PAD) & (colv + kw < W + PAD)
                 for kw in range(KK) if kw != PAD}
        for g in range(NTP // TPG):
            pieces = []
            for j in range(TPG):
                t = g * TPG + j
                if t < NT:
                    kh, kw = divmod(t, KK)
                    tap = x_ref[0, :, pl.ds(base + kh * W + kw, L)]      # (Cin, L) f32
                    if kw != PAD:                                        # center col always valid
                        tap = jnp.where(valid[kw], tap, 0.0)
                    pieces.append(tap)
                else:
                    pieces.append(jnp.zeros((Cin, L), jnp.float32))      # alignment pad taps
            grp = pieces[0] if len(pieces) == 1 else jnp.concatenate(pieces, axis=0)
            p_ref[g * TPG * Cin:(g + 1) * TPG * Cin, :] = grp.astype(jnp.bfloat16)
        return jnp.dot(wmat_ref[...], p_ref[...], preferred_element_type=jnp.float32)

    def conv_stats_kernel(x_ref, wmat_ref, col_ref, stat_ref, p_ref):
        y = conv_tile(x_ref, wmat_ref, col_ref, p_ref)         # (Cout, L) f32
        yy = y * y
        if L % 128 == 0:
            # VALU-only lane-group partials: (Cout, 128), stored unmasked & lane-dense
            ps = y[:, 0:128]
            pq = yy[:, 0:128]
            for k in range(1, L // 128):
                ps = ps + y[:, k * 128:(k + 1) * 128]
                pq = pq + yy[:, k * 128:(k + 1) * 128]
        else:
            lane0 = lax.broadcasted_iota(jnp.int32, (Cout, 128), 1) == 0
            ps = jnp.where(lane0, jnp.sum(y, axis=1, keepdims=True), 0.0)
            pq = jnp.where(lane0, jnp.sum(yy, axis=1, keepdims=True), 0.0)
        stat_ref[0, 0, 0:Cout, :] = ps
        stat_ref[0, 0, Cout:2 * Cout, :] = pq

    def conv_bn_relu_kernel(x_ref, wmat_ref, col_ref, scale_ref, shift_ref, o_ref, p_ref):
        y = conv_tile(x_ref, wmat_ref, col_ref, p_ref)
        o = jnp.maximum(y * scale_ref[...] + shift_ref[...], 0.0)
        o_ref[...] = o.reshape(1, Cout, L)

    x_spec = pl.BlockSpec((1, Cin, Lp), lambda n, b: (n, 0, 0))
    w_spec = pl.BlockSpec((Cout, KRP), lambda n, b: (0, 0))
    col_spec = pl.BlockSpec((1, L), lambda n, b: (0, 0))
    c_spec = pl.BlockSpec((Cout, 1), lambda n, b: (0, 0))
    stat_spec = pl.BlockSpec((1, 1, 2 * Cout, 128), lambda n, b: (n, b, 0, 0))
    scratch = [pltpu.VMEM((KRP, L), jnp.bfloat16)]
    cparams = pltpu.CompilerParams(dimension_semantics=("parallel", "parallel"),
                                   vmem_limit_bytes=vmem_limit)

    # ---- pass 1: conv -> lane-dense per-(image, band) partial batch statistics ----
    stats = pl.pallas_call(
        conv_stats_kernel,
        out_shape=jax.ShapeDtypeStruct((N, nb, 2 * Cout, 128), jnp.float32),
        grid=(N, nb),
        in_specs=[x_spec, w_spec, col_spec],
        out_specs=stat_spec,
        scratch_shapes=scratch,
        compiler_params=cparams,
    )(xf, wmat, colidx)

    # ---- finalize BN batch statistics (training mode, biased variance) ----
    tot = jnp.sum(stats, axis=(0, 1, 3))                       # (2*Cout,)
    mu = tot[:Cout] / M
    var = jnp.maximum(tot[Cout:] / M - mu * mu, 0.0)
    scale = gamma.astype(jnp.float32) / jnp.sqrt(var + eps)
    # Conv bias shifts the batch mean by the same constant, so it cancels inside train-mode BN:
    #   scale*((conv + bias) - (mu + bias)) == scale*(conv - mu)  ->  `bias` is folded away.
    shift = beta.astype(jnp.float32) - mu * scale

    # ---- pass 2: recompute conv (cheap for Cin << Cout) + fused BN affine + ReLU ----
    out_flat = pl.pallas_call(
        conv_bn_relu_kernel,
        out_shape=jax.ShapeDtypeStruct((N, Cout, H * W), jnp.float32),
        grid=(N, nb),
        in_specs=[x_spec, w_spec, col_spec, c_spec, c_spec],
        out_specs=pl.BlockSpec((1, Cout, L), lambda n, b: (n, 0, b)),
        scratch_shapes=scratch,
        compiler_params=cparams,
    )(xf, wmat, colidx, scale.reshape(Cout, 1), shift.reshape(Cout, 1))

    return out_flat.reshape(N, Cout, H, W)


def _reference(x, weight, bias, gamma, beta, eps=1e-5):
    """Pure-JAX f32 reference of the PyTorch forward (train-mode BatchNorm)."""
    p = weight.shape[2] // 2
    y = lax.conv_general_dilated(
        x, weight, window_strides=(1, 1), padding=((p, p), (p, p)),
        dimension_numbers=("NCHW", "OIHW", "NCHW"))
    y = y + bias.reshape(1, -1, 1, 1)
    mean = jnp.mean(y, axis=(0, 2, 3), keepdims=True)
    var = jnp.mean((y - mean) ** 2, axis=(0, 2, 3), keepdims=True)
    yn = (y - mean) / jnp.sqrt(var + eps)
    yn = yn * gamma.reshape(1, -1, 1, 1) + beta.reshape(1, -1, 1, 1)
    return jnp.maximum(yn, 0.0)


if __name__ == "__main__":
    key = jax.random.PRNGKey(0)
    k_x, k_w, k_b, k_g, k_be = jax.random.split(key, 5)

    N, Cin, H, W = 2, 1, 16, 16       # module defaults: in_channels=1
    Cout, KH, KW = 16, 5, 5           # out_channels=16, kernel_size=5

    x = jax.random.normal(k_x, (N, Cin, H, W), dtype=jnp.float32)
    weight = 0.1 * jax.random.normal(k_w, (Cout, Cin, KH, KW), dtype=jnp.float32)
    bias = 0.1 * jax.random.normal(k_b, (Cout,), dtype=jnp.float32)
    gamma = 1.0 + 0.1 * jax.random.normal(k_g, (Cout,), dtype=jnp.float32)
    beta = 0.1 * jax.random.normal(k_be, (Cout,), dtype=jnp.float32)

    out = conv_layer_deepfuse(x, weight, bias, gamma, beta)
    out = jax.block_until_ready(out)

    ref = jax.block_until_ready(_reference(x, weight, bias, gamma, beta))
    assert out.shape == (N, Cout, H, W)
    # bf16 MXU feed -> compare at bf16-appropriate tolerance
    assert jnp.allclose(out, ref, rtol=2e-2, atol=2e-2), "mismatch vs reference"

    print("KERNEL_OK")
</pallas_src>

<mosaic_0001>
module attributes {stable_mosaic.version = 11 : i64} {
  func.func @conv_stats_kernel(%arg0: i32, %arg1: i32, %arg2: memref<1x1x324xf32, #tpu.memory_space<vmem>>, %arg3: memref<16x32xbf16, #tpu.memory_space<vmem>>, %arg4: memref<1x256xi32, #tpu.memory_space<vmem>>, %arg5: memref<1x1x32x128xf32, #tpu.memory_space<vmem>>, %arg6: memref<32x256xbf16, #tpu.memory_space<vmem>>) attributes {dimension_semantics = [#tpu.dimension_semantics<parallel>, #tpu.dimension_semantics<parallel>], iteration_bounds = array<i64: 2, 1>, scalar_prefetch = 0 : i64, scratch_operands = 1 : i64, tpu.core_type = #tpu.core_type<tc>, window_params = [{transform_indices = @transform_0, window_bounds = array<i64: 1, 1, 324>}, {pipeline_mode = #tpu.pipeline_mode<synchronous>, transform_indices = @transform_1, window_bounds = array<i64: 16, 32>}, {pipeline_mode = #tpu.pipeline_mode<synchronous>, transform_indices = @transform_2, window_bounds = array<i64: 1, 256>}, {transform_indices = @transform_3, window_bounds = array<i64: 1, 1, 32, 128>}]} {
    %c0 = arith.constant 0 : index
    %c0_0 = arith.constant 0 : index
    %0 = vector.load %arg4[%c0, %c0_0] : memref<1x256xi32, #tpu.memory_space<vmem>>, vector<1x256xi32>
    %c0_i32 = arith.constant 0 : i32
    %1 = vector.broadcast %c0_i32 : i32 to vector<1x256xi32>
    %2 = arith.addi %0, %1 : vector<1x256xi32>
    %c2_i32 = arith.constant 2 : i32
    %3 = vector.broadcast %c2_i32 : i32 to vector<1x256xi32>
    %4 = arith.cmpi sge, %2, %3 : vector<1x256xi32>
    %c0_i32_1 = arith.constant 0 : i32
    %5 = vector.broadcast %c0_i32_1 : i32 to vector<1x256xi32>
    %6 = arith.addi %0, %5 : vector<1x256xi32>
    %c18_i32 = arith.constant 18 : i32
    %7 = vector.broadcast %c18_i32 : i32 to vector<1x256xi32>
    %8 = arith.cmpi slt, %6, %7 : vector<1x256xi32>
    %9 = arith.andi %4, %8 : vector<1x256xi1>
    %c1_i32 = arith.constant 1 : i32
    %10 = vector.broadcast %c1_i32 : i32 to vector<1x256xi32>
    %11 = arith.addi %0, %10 : vector<1x256xi32>
    %c2_i32_2 = arith.constant 2 : i32
    %12 = vector.broadcast %c2_i32_2 : i32 to vector<1x256xi32>
    %13 = arith.cmpi sge, %11, %12 : vector<1x256xi32>
    %c1_i32_3 = arith.constant 1 : i32
    %14 = vector.broadcast %c1_i32_3 : i32 to vector<1x256xi32>
    %15 = arith.addi %0, %14 : vector<1x256xi32>
    %c18_i32_4 = arith.constant 18 : i32
    %16 = vector.broadcast %c18_i32_4 : i32 to vector<1x256xi32>
    %17 = arith.cmpi slt, %15, %16 : vector<1x256xi32>
    %18 = arith.andi %13, %17 : vector<1x256xi1>
    %c3_i32 = arith.constant 3 : i32
    %19 = vector.broadcast %c3_i32 : i32 to vector<1x256xi32>
    %20 = arith.addi %0, %19 : vector<1x256xi32>
    %c2_i32_5 = arith.constant 2 : i32
    %21 = vector.broadcast %c2_i32_5 : i32 to vector<1x256xi32>
    %22 = arith.cmpi sge, %20, %21 : vector<1x256xi32>
    %c3_i32_6 = arith.constant 3 : i32
    %23 = vector.broadcast %c3_i32_6 : i32 to vector<1x256xi32>
    %24 = arith.addi %0, %23 : vector<1x256xi32>
    %c18_i32_7 = arith.constant 18 : i32
    %25 = vector.broadcast %c18_i32_7 : i32 to vector<1x256xi32>
    %26 = arith.cmpi slt, %24, %25 : vector<1x256xi32>
    %27 = arith.andi %22, %26 : vector<1x256xi1>
    %c4_i32 = arith.constant 4 : i32
    %28 = vector.broadcast %c4_i32 : i32 to vector<1x256xi32>
    %29 = arith.addi %0, %28 : vector<1x256xi32>
    %c2_i32_8 = arith.constant 2 : i32
    %30 = vector.broadcast %c2_i32_8 : i32 to vector<1x256xi32>
    %31 = arith.cmpi sge, %29, %30 : vector<1x256xi32>
    %c4_i32_9 = arith.constant 4 : i32
    %32 = vector.broadcast %c4_i32_9 : i32 to vector<1x256xi32>
    %33 = arith.addi %0, %32 : vector<1x256xi32>
    %c18_i32_10 = arith.constant 18 : i32
    %34 = vector.broadcast %c18_i32_10 : i32 to vector<1x256xi32>
    %35 = arith.cmpi slt, %33, %34 : vector<1x256xi32>
    %36 = arith.andi %31, %35 : vector<1x256xi1>
    %c0_11 = arith.constant 0 : index
    %c0_12 = arith.constant 0 : index
    %c0_13 = arith.constant 0 : index
    %37 = vector.load %arg2[%c0_11, %c0_12, %c0_13] : memref<1x1x324xf32, #tpu.memory_space<vmem>>, vector<1x1x256xf32>
    %38 = vector.shape_cast %37 : vector<1x1x256xf32> to vector<1x256xf32>
    %cst = arith.constant 0.000000e+00 : f32
    %39 = vector.broadcast %cst : f32 to vector<1x256xf32>
    %40 = arith.select %9, %38, %39 : vector<1x256xi1>, vector<1x256xf32>
    %c0_14 = arith.constant 0 : index
    %c0_15 = arith.constant 0 : index
    %c1 = arith.constant 1 : index
    %41 = vector.load %arg2[%c0_14, %c0_15, %c1] : memref<1x1x324xf32, #tpu.memory_space<vmem>>, vector<1x1x256xf32>
    %42 = vector.shape_cast %41 : vector<1x1x256xf32> to vector<1x256xf32>
    %cst_16 = arith.constant 0.000000e+00 : f32
    %43 = vector.broadcast %cst_16 : f32 to vector<1x256xf32>
    %44 = arith.select %18, %42, %43 : vector<1x256xi1>, vector<1x256xf32>
    %c0_17 = arith.constant 0 : index
    %c0_18 = arith.constant 0 : index
    %c2 = arith.constant 2 : index
    %45 = vector.load %arg2[%c0_17, %c0_18, %c2] : memref<1x1x324xf32, #tpu.memory_space<vmem>>, vector<1x1x256xf32>
    %46 = vector.shape_cast %45 : vector<1x1x256xf32> to vector<1x256xf32>
    %c0_19 = arith.constant 0 : index
    %c0_20 = arith.constant 0 : index
    %c3 = arith.constant 3 : index
    %47 = vector.load %arg2[%c0_19, %c0_20, %c3] : memref<1x1x324xf32, #tpu.memory_space<vmem>>, vector<1x1x256xf32>
    %48 = vector.shape_cast %47 : vector<1x1x256xf32> to vector<1x256xf32>
    %cst_21 = arith.constant 0.000000e+00 : f32
    %49 = vector.broadcast %cst_21 : f32 to vector<1x256xf32>
    %50 = arith.select %27, %48, %49 : vector<1x256xi1>, vector<1x256xf32>
    %c0_22 = arith.constant 0 : index
    %c0_23 = arith.constant 0 : index
    %c4 = arith.constant 4 : index
    %51 = vector.load %arg2[%c0_22, %c0_23, %c4] : memref<1x1x324xf32, #tpu.memory_space<vmem>>, vector<1x1x256xf32>
    %52 = vector.shape_cast %51 : vector<1x1x256xf32> to vector<1x256xf32>
    %cst_24 = arith.constant 0.000000e+00 : f32
    %53 = vector.broadcast %cst_24 : f32 to vector<1x256xf32>
    %54 = arith.select %36, %52, %53 : vector<1x256xi1>, vector<1x256xf32>
    %c0_25 = arith.constant 0 : index
    %c0_26 = arith.constant 0 : index
    %c16 = arith.constant 16 : index
    %55 = vector.load %arg2[%c0_25, %c0_26, %c16] : memref<1x1x324xf32, #tpu.memory_space<vmem>>, vector<1x1x256xf32>
    %56 = vector.shape_cast %55 : vector<1x1x256xf32> to vector<1x256xf32>
    %cst_27 = arith.constant 0.000000e+00 : f32
    %57 = vector.broadcast %cst_27 : f32 to vector<1x256xf32>
    %58 = arith.select %9, %56, %57 : vector<1x256xi1>, vector<1x256xf32>
    %c0_28 = arith.constant 0 : index
    %c0_29 = arith.constant 0 : index
    %c17 = arith.constant 17 : index
    %59 = vector.load %arg2[%c0_28, %c0_29, %c17] : memref<1x1x324xf32, #tpu.memory_space<vmem>>, vector<1x1x256xf32>
    %60 = vector.shape_cast %59 : vector<1x1x256xf32> to vector<1x256xf32>
    %cst_30 = arith.constant 0.000000e+00 : f32
    %61 = vector.broadcast %cst_30 : f32 to vector<1x256xf32>
    %62 = arith.select %18, %60, %61 : vector<1x256xi1>, vector<1x256xf32>
    %c0_31 = arith.constant 0 : index
    %c0_32 = arith.constant 0 : index
    %c18 = arith.constant 18 : index
    %63 = vector.load %arg2[%c0_31, %c0_32, %c18] : memref<1x1x324xf32, #tpu.memory_space<vmem>>, vector<1x1x256xf32>
    %64 = vector.shape_cast %63 : vector<1x1x256xf32> to vector<1x256xf32>
    %65 = tpu.concatenate %40, %44, %46, %50, %54, %58, %62, %64 in 0 : vector<1x256xf32>, vector<1x256xf32>, vector<1x256xf32>, vector<1x256xf32>, vector<1x256xf32>, vector<1x256xf32>, vector<1x256xf32>, vector<1x256xf32> -> vector<8x256xf32>
    %66 = arith.truncf %65 : vector<8x256xf32> to vector<8x256xbf16>
    %c0_33 = arith.constant 0 : index
    %c0_34 = arith.constant 0 : index
    %67 = vector.load %arg6[%c0_33, %c0_34] : memref<32x256xbf16, #tpu.memory_space<vmem>>, vector<8x256xbf16>
    tpu.vector_store %arg6[%c0_33, %c0_34], %66 {strides = array<i32>} : memref<32x256xbf16, #tpu.memory_space<vmem>>, vector<8x256xbf16>,
    %c0_35 = arith.constant 0 : index
    %c0_36 = arith.constant 0 : index
    %c19 = arith.constant 19 : index
    %68 = vector.load %arg2[%c0_35, %c0_36, %c19] : memref<1x1x324xf32, #tpu.memory_space<vmem>>, vector<1x1x256xf32>
    %69 = vector.shape_cast %68 : vector<1x1x256xf32> to vector<1x256xf32>
    %cst_37 = arith.constant 0.000000e+00 : f32
    %70 = vector.broadcast %cst_37 : f32 to vector<1x256xf32>
    %71 = arith.select %27, %69, %70 : vector<1x256xi1>, vector<1x256xf32>
    %c0_38 = arith.constant 0 : index
    %c0_39 = arith.constant 0 : index
    %c20 = arith.constant 20 : index
    %72 = vector.load %arg2[%c0_38, %c0_39, %c20] : memref<1x1x324xf32, #tpu.memory_space<vmem>>, vector<1x1x256xf32>
    %73 = vector.shape_cast %72 : vector<1x1x256xf32> to vector<1x256xf32>
    %cst_40 = arith.constant 0.000000e+00 : f32
    %74 = vector.broadcast %cst_40 : f32 to vector<1x256xf32>
    %75 = arith.select %36, %73, %74 : vector<1x256xi1>, vector<1x256xf32>
    %c0_41 = arith.constant 0 : index
    %c0_42 = arith.constant 0 : index
    %c32 = arith.constant 32 : index
    %76 = vector.load %arg2[%c0_41, %c0_42, %c32] : memref<1x1x324xf32, #tpu.memory_space<vmem>>, vector<1x1x256xf32>
    %77 = vector.shape_cast %76 : vector<1x1x256xf32> to vector<1x256xf32>
    %cst_43 = arith.constant 0.000000e+00 : f32
    %78 = vector.broadcast %cst_43 : f32 to vector<1x256xf32>
    %79 = arith.select %9, %77, %78 : vector<1x256xi1>, vector<1x256xf32>
    %c0_44 = arith.constant 0 : index
    %c0_45 = arith.constant 0 : index
    %c33 = arith.constant 33 : index
    %80 = vector.load %arg2[%c0_44, %c0_45, %c33] : memref<1x1x324xf32, #tpu.memory_space<vmem>>, vector<1x1x256xf32>
    %81 = vector.shape_cast %80 : vector<1x1x256xf32> to vector<1x256xf32>
    %cst_46 = arith.constant 0.000000e+00 : f32
    %82 = vector.broadcast %cst_46 : f32 to vector<1x256xf32>
    %83 = arith.select %18, %81, %82 : vector<1x256xi1>, vector<1x256xf32>
    %c0_47 = arith.constant 0 : index
    %c0_48 = arith.constant 0 : index
    %c34 = arith.constant 34 : index
    %84 = vector.load %arg2[%c0_47, %c0_48, %c34] : memref<1x1x324xf32, #tpu.memory_space<vmem>>, vector<1x1x256xf32>
    %85 = vector.shape_cast %84 : vector<1x1x256xf32> to vector<1x256xf32>
    %c0_49 = arith.constant 0 : index
    %c0_50 = arith.constant 0 : index
    %c35 = arith.constant 35 : index
    %86 = vector.load %arg2[%c0_49, %c0_50, %c35] : memref<1x1x324xf32, #tpu.memory_space<vmem>>, vector<1x1x256xf32>
    %87 = vector.shape_cast %86 : vector<1x1x256xf32> to vector<1x256xf32>
    %cst_51 = arith.constant 0.000000e+00 : f32
    %88 = vector.broadcast %cst_51 : f32 to vector<1x256xf32>
    %89 = arith.select %27, %87, %88 : vector<1x256xi1>, vector<1x256xf32>
    %c0_52 = arith.constant 0 : index
    %c0_53 = arith.constant 0 : index
    %c36 = arith.constant 36 : index
    %90 = vector.load %arg2[%c0_52, %c0_53, %c36] : memref<1x1x324xf32, #tpu.memory_space<vmem>>, vector<1x1x256xf32>
    %91 = vector.shape_cast %90 : vector<1x1x256xf32> to vector<1x256xf32>
    %cst_54 = arith.constant 0.000000e+00 : f32
    %92 = vector.broadcast %cst_54 : f32 to vector<1x256xf32>
    %93 = arith.select %36, %91, %92 : vector<1x256xi1>, vector<1x256xf32>
    %c0_55 = arith.constant 0 : index
    %c0_56 = arith.constant 0 : index
    %c48 = arith.constant 48 : index
    %94 = vector.load %arg2[%c0_55, %c0_56, %c48] : memref<1x1x324xf32, #tpu.memory_space<vmem>>, vector<1x1x256xf32>
    %95 = vector.shape_cast %94 : vector<1x1x256xf32> to vector<1x256xf32>
    %cst_57 = arith.constant 0.000000e+00 : f32
    %96 = vector.broadcast %cst_57 : f32 to vector<1x256xf32>
    %97 = arith.select %9, %95, %96 : vector<1x256xi1>, vector<1x256xf32>
    %98 = tpu.concatenate %71, %75, %79, %83, %85, %89, %93, %97 in 0 : vector<1x256xf32>, vector<1x256xf32>, vector<1x256xf32>, vector<1x256xf32>, vector<1x256xf32>, vector<1x256xf32>, vector<1x256xf32>, vector<1x256xf32> -> vector<8x256xf32>
    %99 = arith.truncf %98 : vector<8x256xf32> to vector<8x256xbf16>
    %c8 = arith.constant 8 : index
    %c0_58 = arith.constant 0 : index
    %100 = vector.load %arg6[%c8, %c0_58] : memref<32x256xbf16, #tpu.memory_space<vmem>>, vector<8x256xbf16>
    tpu.vector_store %arg6[%c8, %c0_58], %99 {strides = array<i32>} : memref<32x256xbf16, #tpu.memory_space<vmem>>, vector<8x256xbf16>,
    %c0_59 = arith.constant 0 : index
    %c0_60 = arith.constant 0 : index
    %c49 = arith.constant 49 : index
    %101 = vector.load %arg2[%c0_59, %c0_60, %c49] : memref<1x1x324xf32, #tpu.memory_space<vmem>>, vector<1x1x256xf32>
    %102 = vector.shape_cast %101 : vector<1x1x256xf32> to vector<1x256xf32>
    %cst_61 = arith.constant 0.000000e+00 : f32
    %103 = vector.broadcast %cst_61 : f32 to vector<1x256xf32>
    %104 = arith.select %18, %102, %103 : vector<1x256xi1>, vector<1x256xf32>
    %c0_62 = arith.constant 0 : index
    %c0_63 = arith.constant 0 : index
    %c50 = arith.constant 50 : index
    %105 = vector.load %arg2[%c0_62, %c0_63, %c50] : memref<1x1x324xf32, #tpu.memory_space<vmem>>, vector<1x1x256xf32>
    %106 = vector.shape_cast %105 : vector<1x1x256xf32> to vector<1x256xf32>
    %c0_64 = arith.constant 0 : index
    %c0_65 = arith.constant 0 : index
    %c51 = arith.constant 51 : index
    %107 = vector.load %arg2[%c0_64, %c0_65, %c51] : memref<1x1x324xf32, #tpu.memory_space<vmem>>, vector<1x1x256xf32>
    %108 = vector.shape_cast %107 : vector<1x1x256xf32> to vector<1x256xf32>
    %cst_66 = arith.constant 0.000000e+00 : f32
    %109 = vector.broadcast %cst_66 : f32 to vector<1x256xf32>
    %110 = arith.select %27, %108, %109 : vector<1x256xi1>, vector<1x256xf32>
    %c0_67 = arith.constant 0 : index
    %c0_68 = arith.constant 0 : index
    %c52 = arith.constant 52 : index
    %111 = vector.load %arg2[%c0_67, %c0_68, %c52] : memref<1x1x324xf32, #tpu.memory_space<vmem>>, vector<1x1x256xf32>
    %112 = vector.shape_cast %111 : vector<1x1x256xf32> to vector<1x256xf32>
    %cst_69 = arith.constant 0.000000e+00 : f32
    %113 = vector.broadcast %cst_69 : f32 to vector<1x256xf32>
    %114 = arith.select %36, %112, %113 : vector<1x256xi1>, vector<1x256xf32>
    %c0_70 = arith.constant 0 : index
    %c0_71 = arith.constant 0 : index
    %c64 = arith.constant 64 : index
    %115 = vector.load %arg2[%c0_70, %c0_71, %c64] : memref<1x1x324xf32, #tpu.memory_space<vmem>>, vector<1x1x256xf32>
    %116 = vector.shape_cast %115 : vector<1x1x256xf32> to vector<1x256xf32>
    %cst_72 = arith.constant 0.000000e+00 : f32
    %117 = vector.broadcast %cst_72 : f32 to vector<1x256xf32>
    %118 = arith.select %9, %116, %117 : vector<1x256xi1>, vector<1x256xf32>
    %c0_73 = arith.constant 0 : index
    %c0_74 = arith.constant 0 : index
    %c65 = arith.constant 65 : index
    %119 = vector.load %arg2[%c0_73, %c0_74, %c65] : memref<1x1x324xf32, #tpu.memory_space<vmem>>, vector<1x1x256xf32>
    %120 = vector.shape_cast %119 : vector<1x1x256xf32> to vector<1x256xf32>
    %cst_75 = arith.constant 0.000000e+00 : f32
    %121 = vector.broadcast %cst_75 : f32 to vector<1x256xf32>
    %122 = arith.select %18, %120, %121 : vector<1x256xi1>, vector<1x256xf32>
    %c0_76 = arith.constant 0 : index
    %c0_77 = arith.constant 0 : index
    %c66 = arith.constant 66 : index
    %123 = vector.load %arg2[%c0_76, %c0_77, %c66] : memref<1x1x324xf32, #tpu.memory_space<vmem>>, vector<1x1x256xf32>
    %124 = vector.shape_cast %123 : vector<1x1x256xf32> to vector<1x256xf32>
    %c0_78 = arith.constant 0 : index
    %c0_79 = arith.constant 0 : index
    %c67 = arith.constant 67 : index
    %125 = vector.load %arg2[%c0_78, %c0_79, %c67] : memref<1x1x324xf32, #tpu.memory_space<vmem>>, vector<1x1x256xf32>
    %126 = vector.shape_cast %125 : vector<1x1x256xf32> to vector<1x256xf32>
    %cst_80 = arith.constant 0.000000e+00 : f32
    %127 = vector.broadcast %cst_80 : f32 to vector<1x256xf32>
    %128 = arith.select %27, %126, %127 : vector<1x256xi1>, vector<1x256xf32>
    %129 = tpu.concatenate %104, %106, %110, %114, %118, %122, %124, %128 in 0 : vector<1x256xf32>, vector<1x256xf32>, vector<1x256xf32>, vector<1x256xf32>, vector<1x256xf32>, vector<1x256xf32>, vector<1x256xf32>, vector<1x256xf32> -> vector<8x256xf32>
    %130 = arith.truncf %129 : vector<8x256xf32> to vector<8x256xbf16>
    %c16_81 = arith.constant 16 : index
    %c0_82 = arith.constant 0 : index
    %131 = vector.load %arg6[%c16_81, %c0_82] : memref<32x256xbf16, #tpu.memory_space<vmem>>, vector<8x256xbf16>
    tpu.vector_store %arg6[%c16_81, %c0_82], %130 {strides = array<i32>} : memref<32x256xbf16, #tpu.memory_space<vmem>>, vector<8x256xbf16>,
    %c0_83 = arith.constant 0 : index
    %c0_84 = arith.constant 0 : index
    %c68 = arith.constant 68 : index
    %132 = vector.load %arg2[%c0_83, %c0_84, %c68] : memref<1x1x324xf32, #tpu.memory_space<vmem>>, vector<1x1x256xf32>
    %133 = vector.shape_cast %132 : vector<1x1x256xf32> to vector<1x256xf32>
    %cst_85 = arith.constant 0.000000e+00 : f32
    %134 = vector.broadcast %cst_85 : f32 to vector<1x256xf32>
    %135 = arith.select %36, %133, %134 : vector<1x256xi1>, vector<1x256xf32>
    %cst_86 = arith.constant 0.000000e+00 : f32
    %136 = vector.broadcast %cst_86 : f32 to vector<1x256xf32>
    %cst_87 = arith.constant 0.000000e+00 : f32
    %137 = vector.broadcast %cst_87 : f32 to vector<1x256xf32>
    %cst_88 = arith.constant 0.000000e+00 : f32
    %138 = vector.broadcast %cst_88 : f32 to vector<1x256xf32>
    %cst_89 = arith.constant 0.000000e+00 : f32
    %139 = vector.broadcast %cst_89 : f32 to vector<1x256xf32>
    %cst_90 = arith.constant 0.000000e+00 : f32
    %140 = vector.broadcast %cst_90 : f32 to vector<1x256xf32>
    %cst_91 = arith.constant 0.000000e+00 : f32
    %141 = vector.broadcast %cst_91 : f32 to vector<1x256xf32>
    %cst_92 = arith.constant 0.000000e+00 : f32
    %142 = vector.broadcast %cst_92 : f32 to vector<1x256xf32>
    %143 = tpu.concatenate %135, %136, %137, %138, %139, %140, %141, %142 in 0 : vector<1x256xf32>, vector<1x256xf32>, vector<1x256xf32>, vector<1x256xf32>, vector<1x256xf32>, vector<1x256xf32>, vector<1x256xf32>, vector<1x256xf32> -> vector<8x256xf32>
    %144 = arith.truncf %143 : vector<8x256xf32> to vector<8x256xbf16>
    %c24 = arith.constant 24 : index
    %c0_93 = arith.constant 0 : index
    %145 = vector.load %arg6[%c24, %c0_93] : memref<32x256xbf16, #tpu.memory_space<vmem>>, vector<8x256xbf16>
    tpu.vector_store %arg6[%c24, %c0_93], %144 {strides = array<i32>} : memref<32x256xbf16, #tpu.memory_space<vmem>>, vector<8x256xbf16>,
    %c0_94 = arith.constant 0 : index
    %c0_95 = arith.constant 0 : index
    %146 = vector.load %arg3[%c0_94, %c0_95] : memref<16x32xbf16, #tpu.memory_space<vmem>>, vector<16x32xbf16>
    %c0_96 = arith.constant 0 : index
    %c0_97 = arith.constant 0 : index
    %147 = vector.load %arg6[%c0_96, %c0_97] : memref<32x256xbf16, #tpu.memory_space<vmem>>, vector<32x256xbf16>
    %cst_98 = arith.constant dense<0.000000e+00> : vector<16x256xf32>
    %148 = tpu.matmul %146, %147, %cst_98 {dimension_numbers = #tpu.dot_dimension_numbers<[1], [0], [0], [1], [0, 0, 1, 1], [], []>} : vector<16x32xbf16>, vector<32x256xbf16>, vector<16x256xf32> -> vector<16x256xf32>
    %149 = arith.mulf %148, %148 : vector<16x256xf32>
    %150 = vector.extract_strided_slice %148 {offsets = [0, 0], sizes = [16, 128], strides = [1, 1]} : vector<16x256xf32> to vector<16x128xf32>
    %151 = vector.extract_strided_slice %149 {offsets = [0, 0], sizes = [16, 128], strides = [1, 1]} : vector<16x256xf32> to vector<16x128xf32>
    %152 = vector.extract_strided_slice %148 {offsets = [0, 128], sizes = [16, 128], strides = [1, 1]} : vector<16x256xf32> to vector<16x128xf32>
    %153 = arith.addf %150, %152 : vector<16x128xf32>
    %154 = vector.extract_strided_slice %149 {offsets = [0, 128], sizes = [16, 128], strides = [1, 1]} : vector<16x256xf32> to vector<16x128xf32>
    %155 = arith.addf %151, %154 : vector<16x128xf32>
    %c0_99 = arith.constant 0 : index
    %c0_100 = arith.constant 0 : index
    %c0_101 = arith.constant 0 : index
    %c0_102 = arith.constant 0 : index
    %156 = vector.load %arg5[%c0_99, %c0_100, %c0_101, %c0_102] : memref<1x1x32x128xf32, #tpu.memory_space<vmem>>, vector<1x1x16x128xf32>
    %157 = vector.shape_cast %156 : vector<1x1x16x128xf32> to vector<16x128xf32>
    %158 = vector.shape_cast %153 : vector<16x128xf32> to vector<1x1x16x128xf32>
    tpu.vector_store %arg5[%c0_99, %c0_100, %c0_101, %c0_102], %158 {strides = array<i32>} : memref<1x1x32x128xf32, #tpu.memory_space<vmem>>, vector<1x1x16x128xf32>,
    %c0_103 = arith.constant 0 : index
    %c0_104 = arith.constant 0 : index
    %c16_105 = arith.constant 16 : index
    %c0_106 = arith.constant 0 : index
    %159 = vector.load %arg5[%c0_103, %c0_104, %c16_105, %c0_106] : memref<1x1x32x128xf32, #tpu.memory_space<vmem>>, vector<1x1x16x128xf32>
    %160 = vector.shape_cast %159 : vector<1x1x16x128xf32> to vector<16x128xf32>
    %161 = vector.shape_cast %155 : vector<16x128xf32> to vector<1x1x16x128xf32>
    tpu.vector_store %arg5[%c0_103, %c0_104, %c16_105, %c0_106], %161 {strides = array<i32>} : memref<1x1x32x128xf32, #tpu.memory_space<vmem>>, vector<1x1x16x128xf32>,
    return
  }
  func.func @transform_0(%arg0: i32, %arg1: i32) -> (i32, i32, i32) {
    %c0_i32 = arith.constant 0 : i32
    %c0_i32_0 = arith.constant 0 : i32
    %c0_i32_1 = arith.constant 0 : i32
    return %arg0, %c0_i32, %c0_i32_0 : i32, i32, i32
  }
  func.func @transform_1(%arg0: i32, %arg1: i32) -> (i32, i32) {
    %c0_i32 = arith.constant 0 : i32
    %c0_i32_0 = arith.constant 0 : i32
    %c0_i32_1 = arith.constant 0 : i32
    return %c0_i32, %c0_i32_0 : i32, i32
  }
  func.func @transform_2(%arg0: i32, %arg1: i32) -> (i32, i32) {
    %c0_i32 = arith.constant 0 : i32
    %c0_i32_0 = arith.constant 0 : i32
    %c0_i32_1 = arith.constant 0 : i32
    return %c0_i32, %c0_i32_0 : i32, i32
  }
  func.func @transform_3(%arg0: i32, %arg1: i32) -> (i32, i32, i32, i32) {
    %c0_i32 = arith.constant 0 : i32
    %c0_i32_0 = arith.constant 0 : i32
    %c0_i32_1 = arith.constant 0 : i32
    return %arg0, %arg1, %c0_i32, %c0_i32_0 : i32, i32, i32, i32
  }
}

</mosaic_0001>

<llo_original>
// kernel: tpu_custom_call.1
$region0: #{tpu_custom_call.1}
  #allocation0 [shape = 'u32[]', space=smem, size = 0x4, offset = 0x4, fixed_abs, tag = 'smem constant byte address 0x4 - core index']
  #allocation1 [shape = 'u32[72,128]{1,0:T(1,128)}', space=vmem, size = 0x9000, scoped, tag = 'internal scratch']
  #allocation2 [shape = 'bf16[32,256]{1,0:T(8,128)(2,1)}', space=vmem, size = 0x4000, scoped, tag = 'scratch operand']
  %s0 = inlined_call_operand.hbm [shape: f32[2,1,324], index: 0, kind: input, shape index: {}]
  %s1 = inlined_call_operand.hbm [shape: bf16[16,32], index: 1, kind: input, shape index: {}]
  %s2 = inlined_call_operand.hbm [shape: s32[1,256], index: 2, kind: input, shape index: {}]
  %s3 = inlined_call_operand.hbm [shape: f32[2,1,32,128], index: 3, kind: output, shape index: {}]
  %s4 = sld [smem:[#allocation0]]
  $region57: #{tpu_custom_call.1} parent=0
    _
  %s6 = ssub.s32 1, %s4
  %s7 = scalar_select 0, %s6, %s4
  $region1: #{tpu_custom_call.1} parent=0
    #allocation3 [shape = 'u8[3072]{0}', space=vmem, size = 0xc00, scoped, tag = 'input window, operand 0']
    #allocation4 [shape = 's32[2]{0}', space=sflag, size = 0x8, scoped, tag = 'scoped memory for tpu_custom_call.1']
    #allocation5 [shape = 's32[2]{0}', space=sflag, size = 0x8, scoped, tag = 'scoped memory for tpu_custom_call.1']
    #allocation6 [shape = 'u8[4096]{0}', space=vmem, size = 0x1000, scoped, tag = 'input window, operand 1, single buffered']
    #allocation7 [shape = 's32[1]{0}', space=sflag, size = 0x4, scoped, tag = 'scoped memory for tpu_custom_call.1']
    #allocation8 [shape = 'u8[1024]{0}', space=vmem, size = 0x400, scoped, tag = 'input window, operand 2, single buffered']
    #allocation9 [shape = 'u8[32768]{0}', space=vmem, size = 0x8000, scoped, tag = 'output window, operand 0']
    %8 = vsyncpa [#allocation4], 0
    %s9 = scalar_lea.sflag [#allocation4], 1
    %10 = vsyncpa %s9, 0
    %11 = vsyncpa [#allocation7], 0
    %12 = vsyncpa [#allocation5], 0
    %s13 = scalar_lea.sflag [#allocation5], 1
    %14 = vsyncpa %s13, 0
    loop: start=0, step=1, limit=4
    $region2: #{tpu_custom_call.1} parent=1 // loop_pre_header
      _
    $region3: #{tpu_custom_call.1} parent=1 // loop_header
      %s16 = sphi 0, %s20
      %p17 = scmp.ge.s32.totalorder %s16, 4
      %s23 = sphi 0, %s35
      %s24 = sphi 0, %s31
      %s25 = sphi 0, %s23
      %s26 = sphi 0, %s24
      %s27 = sphi 0, %s25
      %s28 = sphi 0, %s26
      %s38 = sphi 0, %s40
      %s41 = sphi 0, %s38
      %s42 = sphi 0, %s41
      %s58 = sphi 0, %s42
      %s62 = sphi 0, %s62
      %s64 = sphi 0, %s62
      %s65 = sphi 0, %s64
      %s79 = sphi 0, %s65
      %s83 = sphi 0, %s83
      %s85 = sphi 0, %s83
      %s86 = sphi 0, %s85
      %s100 = sphi 0, %s86
      %s108 = sphi 0, %s110
      %s111 = sphi 0, %s108
      %s112 = sphi 0, %s111
      %s128 = sphi 0, %s112
    $region4: #{tpu_custom_call.1} parent=1 // loop_header_branch
      %19 = sbr.rel (%p17) target = $region8
    $region5: #{tpu_custom_call.1} parent=1 // loop_body
      %s21 = ssub.s32 %s16, 1
      %s22 = ssub.s32 %s16, 2
      %s29 = sadd.s32 1, %s24
      %p30 = scmp.ge.s32.totalorder %s29, 1
      %s31 = scalar_select %p30, 0, %s29
      %s32 = sadd.s32 1, %s23
      %s33 = scalar_select %p30, %s32, %s23
      %p34 = scmp.ge.s32.totalorder %s33, 2
      %s35 = scalar_select %p34, 0, %s33
      %s36 = ssub.s32 %s23, %s35
      %p37 = scmp.eq.s32.totalorder %s36, 0
      %s39 = sadd.s32 %s38, 1
      %s40 = scalar_select %p37, %s38, %s39
      %p43 = pneg %p37
      %p44 = scmp.eq.s32.totalorder %s16, 1
      %p45 = por %p43, %p44
      %p46 = scmp.ne.s32.totalorder %s38, %s41
      %p47 = scmp.eq.s32.totalorder %s16, 0
      %p48 = por %p46, %p47
      %p49 = scmp.ne.s32.totalorder %s38, %s41
      %p50 = scmp.eq.s32.totalorder %s21, 1
      %p51 = por %p49, %p50
      %p52 = scmp.ne.s32.totalorder %s41, %s42
      %p53 = scmp.eq.s32.totalorder %s21, 0
      %p54 = por %p52, %p53
      %p55 = scmp.ne.s32.totalorder %s41, %s42
      %p56 = scmp.eq.s32.totalorder %s22, 1
      %p57 = por %p55, %p56
      %p59 = scmp.ne.s32.totalorder %s42, %s58
      %p60 = scmp.eq.s32.totalorder %s22, 0
      %p61 = por %p59, %p60
      %s63 = sadd.s32 %s62, 1
      %p66 = scmp.eq.s32.totalorder %s16, 1
      %p67 = scmp.ne.s32.totalorder %s62, %s64
      %p68 = scmp.eq.s32.totalorder %s16, 0
      %p69 = por %p67, %p68
      %p70 = scmp.ne.s32.totalorder %s62, %s64
      %p71 = scmp.eq.s32.totalorder %s21, 1
      %p72 = por %p70, %p71
      %p73 = scmp.ne.s32.totalorder %s64, %s65
      %p74 = scmp.eq.s32.totalorder %s21, 0
      %p75 = por %p73, %p74
      %p76 = scmp.ne.s32.totalorder %s64, %s65
      %p77 = scmp.eq.s32.totalorder %s22, 1
      %p78 = por %p76, %p77
      %p80 = scmp.ne.s32.totalorder %s65, %s79
      %p81 = scmp.eq.s32.totalorder %s22, 0
      %p82 = por %p80, %p81
      %s84 = sadd.s32 %s83, 1
      %p87 = scmp.eq.s32.totalorder %s16, 1
      %p88 = scmp.ne.s32.totalorder %s83, %s85
      %p89 = scmp.eq.s32.totalorder %s16, 0
      %p90 = por %p88, %p89
      %p91 = scmp.ne.s32.totalorder %s83, %s85
      %p92 = scmp.eq.s32.totalorder %s21, 1
      %p93 = por %p91, %p92
      %p94 = scmp.ne.s32.totalorder %s85, %s86
      %p95 = scmp.eq.s32.totalorder %s21, 0
      %p96 = por %p94, %p95
      %p97 = scmp.ne.s32.totalorder %s85, %s86
      %p98 = scmp.eq.s32.totalorder %s22, 1
      %p99 = por %p97, %p98
      %p101 = scmp.ne.s32.totalorder %s86, %s100
      %p102 = scmp.eq.s32.totalorder %s22, 0
      %p103 = por %p101, %p102
      %s104 = ssub.s32 %s23, %s35
      %s105 = ssub.s32 %s24, %s31
      %s106 = sor.u32 %s104, %s105
      %p107 = scmp.eq.s32.totalorder %s106, 0
      %s109 = sadd.s32 %s108, 1
      %s110 = scalar_select %p107, %s108, %s109
      %p113 = pneg %p107
      %p114 = scmp.eq.s32.totalorder %s16, 1
      %p115 = por %p113, %p114
      %p116 = scmp.ne.s32.totalorder %s108, %s111
      %p117 = scmp.eq.s32.totalorder %s16, 0
      %p118 = por %p116, %p117
      %p119 = scmp.ne.s32.totalorder %s108, %s111
      %p120 = scmp.eq.s32.totalorder %s21, 1
      %p121 = por %p119, %p120
      %p122 = scmp.ne.s32.totalorder %s111, %s112
      %p123 = scmp.eq.s32.totalorder %s21, 0
      %p124 = por %p122, %p123
      %p125 = scmp.ne.s32.totalorder %s111, %s112
      %p126 = scmp.eq.s32.totalorder %s22, 1
      %p127 = por %p125, %p126
      %p129 = scmp.ne.s32.totalorder %s112, %s128
      %p130 = scmp.eq.s32.totalorder %s22, 0
      %p131 = por %p129, %p130
      %p132 = scmp.le.s32.totalorder 1, %s16
      %p133 = scmp.lt.s32.totalorder %s16, 3
      %p134 = pnand %p132, %p133
      %p135 = pneg %p134
      // Predicated region
      $region9: #{tpu_custom_call.1} parent=5 // pred_check
        _
      $region10: #{tpu_custom_call.1} parent=5 // pred_check_branch
        %137 = sbr.rel (%p134) target = $region12
      $region11: #{tpu_custom_call.1} parent=5 // pred_region
        %s138 = ssub.s32 %s16, 1
        // Predicated region
        $region13: #{tpu_custom_call.1} parent=11 // pred_check
          %p139 = pneg %p75
        $region14: #{tpu_custom_call.1} parent=11 // pred_check_branch
          %141 = sbr.rel (%p139) target = $region16
        $region15: #{tpu_custom_call.1} parent=11 // pred_region
          %143 = vsyncadd [#allocation7], 0
          %s144 = sshll.u32 %s1, 4
          %s145 = int_to_ptr.hbm [resolvable:$true] %s144
          %s146 = sshll.u32 [#allocation6], 4
          %s147 = int_to_ptr.vmem [resolvable:$true] %s146
          %152 = dma.hbm_to_vmem [thread:$0]  %s145, 128, %s147, [#allocation7], 64, 64, 4
        $region16: #{tpu_custom_call.1} parent=11 // pred_fallthru
          _
        // Predicated region
        $region17: #{tpu_custom_call.1} parent=11 // pred_check
          %p153 = pneg %p96
        $region18: #{tpu_custom_call.1} parent=11 // pred_check_branch
          %155 = sbr.rel (%p153) target = $region20
        $region19: #{tpu_custom_call.1} parent=11 // pred_region
          %157 = vsyncadd [#allocation7], 0
          %s159 = sshll.u32 %s2, 4
          %s160 = int_to_ptr.hbm [resolvable:$true] %s159
          %s161 = sshll.u32 [#allocation8], 4
          %s162 = int_to_ptr.vmem [resolvable:$true] %s161
          %164 = dma.hbm_to_vmem [thread:$0]  %s160, 32, %s162, [#allocation7]
        $region20: #{tpu_custom_call.1} parent=11 // pred_fallthru
          _
      $region12: #{tpu_custom_call.1} parent=5 // pred_fallthru
        _
      %p165 = scmp.lt.s32.totalorder %s16, 2
      // Predicated region
      $region21: #{tpu_custom_call.1} parent=5 // pred_check
        %p166 = pneg %p165
      $region22: #{tpu_custom_call.1} parent=5 // pred_check_branch
        %168 = sbr.rel (%p166) target = $region24
      $region23: #{tpu_custom_call.1} parent=5 // pred_region
        // Predicated region
        $region25: #{tpu_custom_call.1} parent=23 // pred_check
          %p169 = pneg %p48
        $region26: #{tpu_custom_call.1} parent=23 // pred_check_branch
          %171 = sbr.rel (%p169) target = $region28
        $region27: #{tpu_custom_call.1} parent=23 // pred_region
          %s172 = sand.u32 %s38, 1
          %s173 = scalar_lea.sflag [#allocation4], %s172
          %s174 = sand.u32 %s38, 1
          %s175 = smul.addr %s174, 3
          %s176 = scalar_lea.vmem [#allocation3], %s175
          %178 = vsyncadd %s173, 0
          %s179 = smul.addr %s23, 3
          %s180 = scalar_lea.hbm %s0, %s179
          %s182 = sshll.u32 %s180, 4
          %s183 = int_to_ptr.hbm [resolvable:$true] %s182
          %s184 = sshll.u32 %s176, 4
          %s185 = int_to_ptr.vmem [resolvable:$true] %s184
          %187 = dma.hbm_to_vmem [thread:$0]  %s183, 48, %s185, %s173
        $region28: #{tpu_custom_call.1} parent=23 // pred_fallthru
          _
      $region24: #{tpu_custom_call.1} parent=5 // pred_fallthru
        _
      %p188 = scmp.le.s32.totalorder 1, %s16
      %p189 = scmp.lt.s32.totalorder %s16, 3
      %p190 = pnand %p188, %p189
      %p191 = pneg %p190
      // Predicated region
      $region29: #{tpu_custom_call.1} parent=5 // pred_check
        _
      $region30: #{tpu_custom_call.1} parent=5 // pred_check_branch
        %193 = sbr.rel (%p190) target = $region32
      $region31: #{tpu_custom_call.1} parent=5 // pred_region
        %s194 = ssub.s32 %s16, 1
        %s195 = sand.u32 %s41, 1
        %s196 = scalar_lea.sflag [#allocation4], %s195
        %s197 = sand.u32 %s41, 1
        %s198 = smul.addr %s197, 3
        %s199 = scalar_lea.vmem [#allocation3], %s198
        // Predicated region
        $region33: #{tpu_custom_call.1} parent=31 // pred_check
          %p200 = pneg %p54
        $region34: #{tpu_custom_call.1} parent=31 // pred_check_branch
          %202 = sbr.rel (%p200) target = $region36
        $region35: #{tpu_custom_call.1} parent=31 // pred_region
          %204 = dma.done %s196, 48
        $region36: #{tpu_custom_call.1} parent=31 // pred_fallthru
          _
        // Predicated region
        $region37: #{tpu_custom_call.1} parent=31 // pred_check
          %p205 = pneg %p75
        $region38: #{tpu_custom_call.1} parent=31 // pred_check_branch
          %207 = sbr.rel (%p205) target = $region40
        $region39: #{tpu_custom_call.1} parent=31 // pred_region
          %209 = dma.done [#allocation7], 128
        $region40: #{tpu_custom_call.1} parent=31 // pred_fallthru
          _
        // Predicated region
        $region41: #{tpu_custom_call.1} parent=31 // pred_check
          %p210 = pneg %p96
        $region42: #{tpu_custom_call.1} parent=31 // pred_check_branch
          %212 = sbr.rel (%p210) target = $region44
        $region43: #{tpu_custom_call.1} parent=31 // pred_region
          %214 = dma.done [#allocation7], 32
        $region44: #{tpu_custom_call.1} parent=31 // pred_fallthru
          _
        %s215 = sand.u32 %s41, 1
        %s216 = scalar_lea.sflag [#allocation4], %s215
        %s217 = sand.u32 %s41, 1
        %s218 = smul.addr %s217, 3
        %s219 = scalar_lea.vmem [#allocation3], %s218
        %p220 = pneg %p54
        %p221 = pneg %p51
        %p222 = pneg %p75
        %p223 = pneg %p72
        %p224 = pneg %p96
        %p225 = pneg %p93
        %p226 = pneg %p124
        %p227 = pneg %p121
        %s228 = sand.u32 %s111, 1
        %s229 = scalar_lea.sflag [#allocation5], %s228
        %s230 = sand.u32 %s111, 1
        %s231 = smul.addr %s230, 32
        %s232 = scalar_lea.vmem [#allocation9], %s231
        %v234 = vld [vmem:[#allocation8] sm:$0x3]
        %vm235 = vcmp.ge.s32.totalorder %v234, 2
        %vm236 = vcmp.lt.s32.totalorder %v234, 18
        %vm237 = vmand %vm235, %vm236
        %v238 = vadd.s32 %v234, 1
        %vm239 = vcmp.ge.s32.totalorder %v238, 2
        %vm240 = vcmp.lt.s32.totalorder %v238, 18
        %vm241 = vmand %vm239, %vm240
        %v242 = vadd.s32 %v234, 3
        %vm243 = vcmp.ge.s32.totalorder %v242, 2
        %vm244 = vcmp.lt.s32.totalorder %v242, 18
        %vm245 = vmand %vm243, %vm244
        %v246 = vadd.s32 %v234, 4
        %vm247 = vcmp.ge.s32.totalorder %v246, 2
        %vm248 = vcmp.lt.s32.totalorder %v246, 18
        %vm249 = vmand %vm247, %vm248
        %v250 = vld [vmem:[%s199] sm:$0x3]
        %v251 = vsel %vm237, %v250, 0.0
        %v252 = vld [vmem:[%s199] sm:$0x7]
        %254 = vrot.lane.b32.xlu0 %v252, 127
        %v255 = vpop.permute.xlu0 %254
        %v256 = vrot.slane %v255, 1
        %vm257 = vcmask 1039360
        %v258 = vsel %vm257, %v255, %v256
        %v260 = vsel %vm241, %v258, 0.0
        %261 = vrot.lane.b32.xlu0 %v252, 125
        %v262 = vpop.permute.xlu0 %261
        %v263 = vrot.slane %v262, 1
        %vm264 = vcmask 1022976
        %v265 = vsel %vm264, %v262, %v263
        %v267 = vsel %vm245, %v265, 0.0
        %268 = vrot.lane.b32.xlu0 %v252, 124
        %v269 = vpop.permute.xlu0 %268
        %v270 = vrot.slane %v269, 1
        %vm271 = vcmask 1014784
        %v272 = vsel %vm271, %v269, %v270
        %v274 = vsel %vm249, %v272, 0.0
        %275 = vrot.lane.b32.xlu0 %v252, 112
        %v276 = vpop.permute.xlu0 %275
        %v277 = vrot.slane %v276, 1
        %vm278 = vcmask 916480
        %v279 = vsel %vm278, %v276, %v277
        %v281 = vsel %vm237, %v279, 0.0
        %282 = vrot.lane.b32.xlu0 %v252, 111
        %v283 = vpop.permute.xlu0 %282
        %v284 = vrot.slane %v283, 1
        %vm285 = vcmask 908288
        %v286 = vsel %vm285, %v283, %v284
        %v288 = vsel %vm241, %v286, 0.0
        %v290 = vperm.slane %v251, 0
        %v291 = vperm.slane %v251, 1
        %v295 = vperm.slane %v260, 0
        %v296 = vperm.slane %v260, 1
        %v299 = vperm.slane %v252, 0
        %v300 = vperm.slane %v252, 1
        %v301 = vperm.slane %v252, 2
        %302 = vrot.lane.b32.xlu0 %v299, 126
        %v303 = vpop.permute.xlu0 %302
        %304 = vrot.lane.b32.xlu0 %v300, 126
        %v305 = vpop.permute.xlu0 %304
        %306 = vrot.lane.b32.xlu0 %v301, 126
        %v307 = vpop.permute.xlu0 %306
        %vm308 = vcmask 1031168
        %v309 = vsel %vm308, %v303, %v305
        %v310 = vsel %vm308, %v305, %v307
        %v314 = vperm.slane %v267, 0
        %v315 = vperm.slane %v267, 1
        %v319 = vperm.slane %v274, 0
        %v320 = vperm.slane %v274, 1
        %v324 = vperm.slane %v281, 0
        %v325 = vperm.slane %v281, 1
        %v329 = vperm.slane %v288, 0
        %v330 = vperm.slane %v288, 1
        %333 = vrot.lane.b32.xlu0 %v299, 110
        %v334 = vpop.permute.xlu0 %333
        %335 = vrot.lane.b32.xlu0 %v300, 110
        %v336 = vpop.permute.xlu0 %335
        %337 = vrot.lane.b32.xlu0 %v301, 110
        %v338 = vpop.permute.xlu0 %337
        %vm339 = vcmask 900096
        %v340 = vsel %vm339, %v334, %v336
        %v341 = vsel %vm339, %v336, %v338
        %vm344 = vcmask 1040384
        %v345 = vsel %vm344, %v290, %v295
        %v346 = vsel %vm344, %v291, %v296
        %vm347 = vcmask 1041408
        %v348 = vsel %vm347, %v345, %v309
        %v349 = vsel %vm347, %v346, %v310
        %vm350 = vcmask 1042432
        %v351 = vsel %vm350, %v348, %v314
        %v352 = vsel %vm350, %v349, %v315
        %vm353 = vcmask 1043456
        %v354 = vsel %vm353, %v351, %v319
        %v355 = vsel %vm353, %v352, %v320
        %vm356 = vcmask 1044480
        %v357 = vsel %vm356, %v354, %v324
        %v358 = vsel %vm356, %v355, %v325
        %vm359 = vcmask 1045504
        %v360 = vsel %vm359, %v357, %v329
        %v361 = vsel %vm359, %v358, %v330
        %vm362 = vcmask 1046528
        %v363 = vsel %vm362, %v360, %v340
        %v364 = vsel %vm362, %v361, %v341
        %v365 = vpack.c.bf16 %v364, %v363
        %366 = vst [vmem:[#allocation2] sm:$0xff] %v365
        %v367 = vld [vmem:[%s199] sm:$0x7]
        %369 = vrot.lane.b32.xlu0 %v367, 109
        %v370 = vpop.permute.xlu0 %369
        %v371 = vrot.slane %v370, 1
        %vm372 = vcmask 891904
        %v373 = vsel %vm372, %v370, %v371
        %v375 = vsel %vm245, %v373, 0.0
        %376 = vrot.lane.b32.xlu0 %v367, 108
        %v377 = vpop.permute.xlu0 %376
        %v378 = vrot.slane %v377, 1
        %vm379 = vcmask 883712
        %v380 = vsel %vm379, %v377, %v378
        %v382 = vsel %vm249, %v380, 0.0
        %383 = vrot.lane.b32.xlu0 %v367, 96
        %v384 = vpop.permute.xlu0 %383
        %v385 = vrot.slane %v384, 1
        %vm386 = vcmask 785408
        %v387 = vsel %vm386, %v384, %v385
        %v389 = vsel %vm237, %v387, 0.0
        %390 = vrot.lane.b32.xlu0 %v367, 95
        %v391 = vpop.permute.xlu0 %390
        %v392 = vrot.slane %v391, 1
        %vm393 = vcmask 777216
        %v394 = vsel %vm393, %v391, %v392
        %v396 = vsel %vm241, %v394, 0.0
        %397 = vrot.lane.b32.xlu0 %v367, 93
        %v398 = vpop.permute.xlu0 %397
        %v399 = vrot.slane %v398, 1
        %vm400 = vcmask 760832
        %v401 = vsel %vm400, %v398, %v399
        %v403 = vsel %vm245, %v401, 0.0
        %404 = vrot.lane.b32.xlu0 %v367, 92
        %v405 = vpop.permute.xlu0 %404
        %v406 = vrot.slane %v405, 1
        %vm407 = vcmask 752640
        %v408 = vsel %vm407, %v405, %v406
        %v410 = vsel %vm249, %v408, 0.0
        %411 = vrot.lane.b32.xlu0 %v367, 80
        %v412 = vpop.permute.xlu0 %411
        %v413 = vrot.slane %v412, 1
        %vm414 = vcmask 654336
        %v415 = vsel %vm414, %v412, %v413
        %v417 = vsel %vm237, %v415, 0.0
        %v419 = vperm.slane %v375, 0
        %v420 = vperm.slane %v375, 1
        %v424 = vperm.slane %v382, 0
        %v425 = vperm.slane %v382, 1
        %v429 = vperm.slane %v389, 0
        %v430 = vperm.slane %v389, 1
        %v434 = vperm.slane %v396, 0
        %v435 = vperm.slane %v396, 1
        %v438 = vperm.slane %v367, 0
        %v439 = vperm.slane %v367, 1
        %v440 = vperm.slane %v367, 2
        %441 = vrot.lane.b32.xlu0 %v438, 94
        %v442 = vpop.permute.xlu0 %441
        %443 = vrot.lane.b32.xlu0 %v439, 94
        %v444 = vpop.permute.xlu0 %443
        %445 = vrot.lane.b32.xlu0 %v440, 94
        %v446 = vpop.permute.xlu0 %445
        %vm447 = vcmask 769024
        %v448 = vsel %vm447, %v442, %v444
        %v449 = vsel %vm447, %v444, %v446
        %v453 = vperm.slane %v403, 0
        %v454 = vperm.slane %v403, 1
        %v458 = vperm.slane %v410, 0
        %v459 = vperm.slane %v410, 1
        %v463 = vperm.slane %v417, 0
        %v464 = vperm.slane %v417, 1
        %v467 = vsel %vm344, %v419, %v424
        %v468 = vsel %vm344, %v420, %v425
        %v469 = vsel %vm347, %v467, %v429
        %v470 = vsel %vm347, %v468, %v430
        %v471 = vsel %vm350, %v469, %v434
        %v472 = vsel %vm350, %v470, %v435
        %v473 = vsel %vm353, %v471, %v448
        %v474 = vsel %vm353, %v472, %v449
        %v475 = vsel %vm356, %v473, %v453
        %v476 = vsel %vm356, %v474, %v454
        %v477 = vsel %vm359, %v475, %v458
        %v478 = vsel %vm359, %v476, %v459
        %v479 = vsel %vm362, %v477, %v463
        %v480 = vsel %vm362, %v478, %v464
        %v481 = vpack.c.bf16 %v480, %v479
        %482 = vst [vmem:[#allocation2 + $0x8] sm:$0xff] %v481
        %v483 = vld [vmem:[%s199] sm:$0x7]
        %485 = vrot.lane.b32.xlu0 %v483, 79
        %v486 = vpop.permute.xlu0 %485
        %v487 = vrot.slane %v486, 1
        %vm488 = vcmask 646144
        %v489 = vsel %vm488, %v486, %v487
        %v491 = vsel %vm241, %v489, 0.0
        %492 = vrot.lane.b32.xlu0 %v483, 77
        %v493 = vpop.permute.xlu0 %492
        %v494 = vrot.slane %v493, 1
        %vm495 = vcmask 629760
        %v496 = vsel %vm495, %v493, %v494
        %v498 = vsel %vm245, %v496, 0.0
        %499 = vrot.lane.b32.xlu0 %v483, 76
        %v500 = vpop.permute.xlu0 %499
        %v501 = vrot.slane %v500, 1
        %vm502 = vcmask 621568
        %v503 = vsel %vm502, %v500, %v501
        %v505 = vsel %vm249, %v503, 0.0
        %506 = vrot.lane.b32.xlu0 %v483, 64
        %v507 = vpop.permute.xlu0 %506
        %v508 = vrot.slane %v507, 1
        %vm509 = vcmask 523264
        %v510 = vsel %vm509, %v507, %v508
        %v512 = vsel %vm237, %v510, 0.0
        %513 = vrot.lane.b32.xlu0 %v483, 63
        %v514 = vpop.permute.xlu0 %513
        %v515 = vrot.slane %v514, 1
        %vm516 = vcmask 515072
        %v517 = vsel %vm516, %v514, %v515
        %v519 = vsel %vm241, %v517, 0.0
        %520 = vrot.lane.b32.xlu0 %v483, 61
        %v521 = vpop.permute.xlu0 %520
        %v522 = vrot.slane %v521, 1
        %vm523 = vcmask 498688
        %v524 = vsel %vm523, %v521, %v522
        %v526 = vsel %vm245, %v524, 0.0
        %v528 = vperm.slane %v491, 0
        %v529 = vperm.slane %v491, 1
        %v532 = vperm.slane %v483, 0
        %v533 = vperm.slane %v483, 1
        %v534 = vperm.slane %v483, 2
        %535 = vrot.lane.b32.xlu0 %v532, 78
        %v536 = vpop.permute.xlu0 %535
        %537 = vrot.lane.b32.xlu0 %v533, 78
        %v538 = vpop.permute.xlu0 %537
        %539 = vrot.lane.b32.xlu0 %v534, 78
        %v540 = vpop.permute.xlu0 %539
        %vm541 = vcmask 637952
        %v542 = vsel %vm541, %v536, %v538
        %v543 = vsel %vm541, %v538, %v540
        %v547 = vperm.slane %v498, 0
        %v548 = vperm.slane %v498, 1
        %v552 = vperm.slane %v505, 0
        %v553 = vperm.slane %v505, 1
        %v557 = vperm.slane %v512, 0
        %v558 = vperm.slane %v512, 1
        %v562 = vperm.slane %v519, 0
        %v563 = vperm.slane %v519, 1
        %566 = vrot.lane.b32.xlu0 %v532, 62
        %v567 = vpop.permute.xlu0 %566
        %568 = vrot.lane.b32.xlu0 %v533, 62
        %v569 = vpop.permute.xlu0 %568
        %570 = vrot.lane.b32.xlu0 %v534, 62
        %v571 = vpop.permute.xlu0 %570
        %vm572 = vcmask 506880
        %v573 = vsel %vm572, %v567, %v569
        %v574 = vsel %vm572, %v569, %v571
        %v578 = vperm.slane %v526, 0
        %v579 = vperm.slane %v526, 1
        %v582 = vsel %vm344, %v528, %v542
        %v583 = vsel %vm344, %v529, %v543
        %v584 = vsel %vm347, %v582, %v547
        %v585 = vsel %vm347, %v583, %v548
        %v586 = vsel %vm350, %v584, %v552
        %v587 = vsel %vm350, %v585, %v553
        %v588 = vsel %vm353, %v586, %v557
        %v589 = vsel %vm353, %v587, %v558
        %v590 = vsel %vm356, %v588, %v562
        %v591 = vsel %vm356, %v589, %v563
        %v592 = vsel %vm359, %v590, %v573
        %v593 = vsel %vm359, %v591, %v574
        %v594 = vsel %vm362, %v592, %v578
        %v595 = vsel %vm362, %v593, %v579
        %v596 = vpack.c.bf16 %v595, %v594
        %597 = vst [vmem:[#allocation2 + $0x10] sm:$0xff] %v596
        %v598 = vld [vmem:[%s199] sm:$0x7]
        %600 = vrot.lane.b32.xlu0 %v598, 60
        %v601 = vpop.permute.xlu0 %600
        %v602 = vrot.slane %v601, 1
        %vm603 = vcmask 490496
        %v604 = vsel %vm603, %v601, %v602
        %v606 = vsel %vm249, %v604, 0.0
        %v608 = vperm.slane %v606, 0
        %v609 = vperm.slane %v606, 1
        %v612 = vsel %vm344, %v608, 0.0
        %v613 = vsel %vm344, %v609, 0.0
        %v614 = vsel %vm347, %v612, 0.0
        %v615 = vsel %vm347, %v613, 0.0
        %v616 = vsel %vm350, %v614, 0.0
        %v617 = vsel %vm350, %v615, 0.0
        %v618 = vsel %vm353, %v616, 0.0
        %v619 = vsel %vm353, %v617, 0.0
        %v620 = vsel %vm356, %v618, 0.0
        %v621 = vsel %vm356, %v619, 0.0
        %v622 = vsel %vm359, %v620, 0.0
        %v623 = vsel %vm359, %v621, 0.0
        %v624 = vsel %vm362, %v622, 0.0
        %v625 = vsel %vm362, %v623, 0.0
        %v626 = vpack.c.bf16 %v625, %v624
        %627 = vst [vmem:[#allocation2 + $0x18] sm:$0xff] %v626
        %v628 = vld [vmem:[#allocation6] sm:$0xf]
        %v629 = vld [vmem:[#allocation6 + $0x4] sm:$0xf]
        %v630 = vld [vmem:[#allocation2] sm:$0xff]
        %v631 = vld [vmem:[#allocation2 + $0x8] sm:$0xff]
        %v632 = vld [vmem:[#allocation2 + $0x10] sm:$0xff]
        %v633 = vld [vmem:[#allocation2 + $0x18] sm:$0xff]
        %v636 = vunpack.c.l.b16 %v628
        %v637 = vunpack.c.l.b16 %v629
        %v638 = vpack.c.b16 %v637, %v636
        %v643 = vunpack.c.l.b16 %v630
        %v644 = vunpack.c.h.b16 %v630
        %v645 = vunpack.c.l.b16 %v631
        %v646 = vunpack.c.h.b16 %v631
        %v647 = vunpack.c.l.b16 %v632
        %v648 = vunpack.c.h.b16 %v632
        %v649 = vunpack.c.l.b16 %v633
        %v650 = vunpack.c.h.b16 %v633
        %v651 = vpack.c.b16 %v645, %v643
        %v652 = vpack.c.b16 %v646, %v644
        %v653 = vpack.c.b16 %v649, %v647
        %v654 = vpack.c.b16 %v650, %v648
        %vm659 = vcmask 261120
        %v661 = vsel %vm659, %v638, 0
        %663 = vmatpush.bf16.msra.mxu0 0
        %664 = vmatpush.bf16.msra.mxu0 0
        %665 = vmatpush.bf16.msra.mxu0 0
        %666 = vmatpush.bf16.msra.mxu0 0
        %667 = vmatpush.bf16.msra.mxu0 0
        %668 = vmatpush.bf16.msra.mxu0 0
        %669 = vmatpush.bf16.msra.mxu0 %v653
        %670 = vmatpush.bf16.msra.mxu0 %v651
        %671 = vmatmul.bf16.gmra.mxu0 %v661
        %v672 = vpop.f32.mrf.mxu0
        %v673 = vadd.f32 0.0, %v672
        %v674 = vpop.f32.mrf.mxu0
        %v675 = vadd.f32 0.0, %v674
        %676 = vdwg.mxu0
        %677 = vmatpush.bf16.msra.mxu0 0
        %678 = vmatpush.bf16.msra.mxu0 0
        %679 = vmatpush.bf16.msra.mxu0 0
        %680 = vmatpush.bf16.msra.mxu0 0
        %681 = vmatpush.bf16.msra.mxu0 0
        %682 = vmatpush.bf16.msra.mxu0 0
        %683 = vmatpush.bf16.msra.mxu0 %v654
        %684 = vmatpush.bf16.msra.mxu0 %v652
        %685 = vmatmul.bf16.gmra.mxu0 %v661
        %v686 = vpop.f32.mrf.mxu0
        %v687 = vadd.f32 0.0, %v686
        %v688 = vpop.f32.mrf.mxu0
        %v689 = vadd.f32 0.0, %v688
        %690 = vdwg.mxu0
        %v691 = vmul.f32 %v673, %v673
        %v692 = vmul.f32 %v687, %v687
        %v693 = vmul.f32 %v675, %v675
        %v694 = vmul.f32 %v689, %v689
        %v695 = vadd.f32 %v673, %v687
        %v696 = vadd.f32 %v675, %v689
        %v697 = vadd.f32 %v691, %v692
        %v698 = vadd.f32 %v693, %v694
        %699 = vst [vmem:[%s232] sm:$0xff] %v695
        %700 = vst [vmem:[%s232 + $0x8] sm:$0xff] %v696
        %701 = vst [vmem:[%s232 + $0x10] sm:$0xff] %v697
        %702 = vst [vmem:[%s232 + $0x18] sm:$0xff] %v698
        %s703 = sand.u32 %s111, 1
        %s704 = scalar_lea.sflag [#allocation5], %s703
        %s705 = sand.u32 %s111, 1
        %s706 = smul.addr %s705, 32
        %s707 = scalar_lea.vmem [#allocation9], %s706
        // Predicated region
        $region45: #{tpu_custom_call.1} parent=31 // pred_check
          %p708 = pneg %p121
        $region46: #{tpu_custom_call.1} parent=31 // pred_check_branch
          %710 = sbr.rel (%p708) target = $region48
        $region47: #{tpu_custom_call.1} parent=31 // pred_region
          %712 = vsyncadd %s704, 0
          %s713 = smul.addr %s26, 4
          %s714 = smul.addr %s25, 4
          %s715 = sadd.s32 %s713, %s714
          %s716 = smul.addr %s715, 8
          %s717 = scalar_lea.hbm %s3, %s716
          %s718 = sshll.u32 %s707, 4
          %s719 = int_to_ptr.vmem [resolvable:$true] %s718
          %s720 = sshll.u32 %s717, 4
          %s721 = int_to_ptr.hbm [resolvable:$true] %s720
          %726 = dma.vmem_to_hbm [thread:$0]  %s719, 512, %s721, %s704, 128, 128, 8
        $region48: #{tpu_custom_call.1} parent=31 // pred_fallthru
          _
      $region32: #{tpu_custom_call.1} parent=5 // pred_fallthru
        _
      %p727 = scmp.le.s32.totalorder 2, %s16
      // Predicated region
      $region49: #{tpu_custom_call.1} parent=5 // pred_check
        %p728 = pneg %p727
      $region50: #{tpu_custom_call.1} parent=5 // pred_check_branch
        %730 = sbr.rel (%p728) target = $region52
      $region51: #{tpu_custom_call.1} parent=5 // pred_region
        %s731 = ssub.s32 %s16, 2
        // Predicated region
        $region53: #{tpu_custom_call.1} parent=51 // pred_check
          %p732 = pneg %p127
        $region54: #{tpu_custom_call.1} parent=51 // pred_check_branch
          %734 = sbr.rel (%p732) target = $region56
        $region55: #{tpu_custom_call.1} parent=51 // pred_region
          %s735 = sand.u32 %s112, 1
          %s736 = scalar_lea.sflag [#allocation5], %s735
          %s737 = sand.u32 %s112, 1
          %s738 = smul.addr %s737, 32
          %s739 = scalar_lea.vmem [#allocation9], %s738
          %741 = dma.done %s736, 512
        $region56: #{tpu_custom_call.1} parent=51 // pred_fallthru
          _
      $region52: #{tpu_custom_call.1} parent=5 // pred_fallthru
        _
    $region6: #{tpu_custom_call.1} parent=1 // loop_footer
      %s20 = sadd.s32 1, %s16
    $region7: #{tpu_custom_call.1} parent=1 // loop_footer_branch
      %15 = sbr.rel target = $region3
    $region8: #{tpu_custom_call.1} parent=1 // loop_exit
      _
    %742 = vsyncpa [#allocation4], 1
    %s743 = scalar_lea.sflag [#allocation4], 1
    %744 = vsyncpa %s743, 1
    %745 = vsyncpa [#allocation7], 1
    %746 = vsyncpa [#allocation5], 1
    %s747 = scalar_lea.sflag [#allocation5], 1
    %748 = vsyncpa %s747, 1

</llo_original>
